<compile_context>
chip_gen: v7x
topology: tpu7x:2x2x1
jax: 0.10.0
libtpu: 0.0.40
codegen_flags: <defaults>
</compile_context>

<pallas_src>
import functools

import jax
import jax.numpy as jnp
from jax.experimental import pallas as pl
from jax.experimental.pallas import tpu as pltpu

HIDDEN = 128


def _round_up(x, m):
    return ((x + m - 1) // m) * m


def _cdiv(a, b):
    return -(-a // b)


def _vmem_capacity_bytes():
    try:
        return int(pltpu.get_tpu_info().vmem_capacity_bytes)
    except Exception:
        return 64 * 1024 * 1024  # conservative floor (v7x physical); v5e/v6e have 128 MiB


def _const_spec(shape):
    """BlockSpec for a grid-invariant (resident) operand; single-buffered when supported."""
    idx = lambda i, _n=len(shape): (0,) * _n
    if hasattr(pl, "Buffered"):
        try:
            return pl.BlockSpec(shape, idx, pipeline_mode=pl.Buffered(1))
        except TypeError:
            pass
    return pl.BlockSpec(shape, idx)


def _beta_regressor_kernel(x_ref, w1t_ref, b1_ref, wat_ref, ba_ref, wbt_ref, bb_ref,
                           alpha_ref, beta_ref):
    # x: (TB, D) f32; w1t: (D, H); wat/wbt: (H, Dp); biases broadcast rows.
    x = x_ref[...]

    # fc1 + ReLU (f32 accumulate).
    h = jnp.dot(x, w1t_ref[...], preferred_element_type=jnp.float32) + b1_ref[...]
    h = jnp.maximum(h, 0.0)

    # fc_alpha / fc_beta heads (lane-dense Dp-wide outputs).
    za = jnp.dot(h, wat_ref[...], preferred_element_type=jnp.float32) + ba_ref[...]
    zb = jnp.dot(h, wbt_ref[...], preferred_element_type=jnp.float32) + bb_ref[...]

    # Numerically stable softplus: max(z,0) + log1p(exp(-|z|)).
    # TODO(synk): for 2*D << 128 a lane-repack (several rows per 128-lane group)
    # would cut the padded softplus / writeback work; not implemented here.
    def _softplus(z):
        return jnp.maximum(z, 0.0) + jnp.log1p(jnp.exp(-jnp.abs(z)))

    alpha_ref[...] = _softplus(za) + 1e-6
    beta_ref[...] = _softplus(zb) + 1e-6


def init_params(key, input_dim):
    """PyTorch nn.Linear-style init (uniform +/- 1/sqrt(fan_in)), PyTorch layout."""
    k1, k2, k3, k4, k5, k6 = jax.random.split(key, 6)
    bound1 = 1.0 / (input_dim ** 0.5)
    bound2 = 1.0 / (HIDDEN ** 0.5)
    return {
        "w1": jax.random.uniform(k1, (HIDDEN, input_dim), jnp.float32, -bound1, bound1),
        "b1": jax.random.uniform(k2, (HIDDEN,), jnp.float32, -bound1, bound1),
        "wa": jax.random.uniform(k3, (input_dim, HIDDEN), jnp.float32, -bound2, bound2),
        "ba": jax.random.uniform(k4, (input_dim,), jnp.float32, -bound2, bound2),
        "wb": jax.random.uniform(k5, (input_dim, HIDDEN), jnp.float32, -bound2, bound2),
        "bb": jax.random.uniform(k6, (input_dim,), jnp.float32, -bound2, bound2),
    }


def prepare_params(params):
    """One-time layout prep (outside the hot path): transpose, pad the head
    output dim to a 128-lane multiple. All f32 (weights are tiny & resident)."""
    D = params["w1"].shape[1]
    Dp = max(128, _round_up(D, 128))
    pad = Dp - D
    return {
        "w1t": params["w1"].T.astype(jnp.float32),                               # (D, H)
        "b1": params["b1"].reshape(1, HIDDEN).astype(jnp.float32),               # (1, H)
        "wat": jnp.pad(params["wa"].T, ((0, 0), (0, pad))).astype(jnp.float32),  # (H, Dp)
        "ba": jnp.pad(params["ba"], (0, pad)).reshape(1, Dp).astype(jnp.float32),
        "wbt": jnp.pad(params["wb"].T, ((0, 0), (0, pad))).astype(jnp.float32),  # (H, Dp)
        "bb": jnp.pad(params["bb"], (0, pad)).reshape(1, Dp).astype(jnp.float32),
    }


@functools.partial(jax.jit, static_argnames=("tb",))
def _forward_heads(X, w1t, b1, wat, ba, wbt, bb, *, tb=512):
    """Runs the Pallas kernel; returns padded (Bp, Dp) alpha / beta softplus slabs."""
    B, D = X.shape
    Dp = wat.shape[1]  # static (padded head width, multiple of 128)

    # ---- VMEM-budgeted batch tile -----------------------------------------
    # Per batch row (bytes): X f32 double-buffered (8*D) + two f32 output tiles
    # double-buffered (16*Dp) + in-kernel intermediates h/za/zb (~8*H + 8*Dp).
    per_row = 8 * D + 24 * Dp + 8 * HIDDEN + 1024
    weights_bytes = (D * HIDDEN + HIDDEN + 2 * (HIDDEN * Dp + Dp)) * 4
    vmem_cap = _vmem_capacity_bytes()
    budget = int(0.7 * vmem_cap)
    tb_cap = max(8, ((budget - weights_bytes) // per_row) // 8 * 8)
    tb_max = max(8, min(int(tb), tb_cap))

    # Balanced tiles: pad < 8 rows per tile instead of up to a whole tile,
    # and give both v7x TensorCores work when there are enough rows.
    B8 = _round_up(B, 8)
    ntiles = _cdiv(B8, tb_max)
    if ntiles == 1 and B8 >= 16:
        ntiles = 2
    TB = _round_up(_cdiv(B8, ntiles), 8)
    Bp = TB * ntiles

    Xp = X if Bp == B else jnp.pad(X, ((0, Bp - B), (0, 0)))

    est_vmem = weights_bytes + per_row * TB
    vmem_limit = int(min(vmem_cap, max(est_vmem + (4 << 20), 16 << 20)))

    cost = pl.CostEstimate(
        flops=2 * Bp * HIDDEN * (D + 2 * Dp),
        transcendentals=4 * Bp * Dp,                       # exp + log1p per head element
        bytes_accessed=(Bp * D + 2 * Bp * Dp) * 4 + weights_bytes,
    )

    alpha_p, beta_p = pl.pallas_call(
        _beta_regressor_kernel,
        out_shape=(jax.ShapeDtypeStruct((Bp, Dp), jnp.float32),
                   jax.ShapeDtypeStruct((Bp, Dp), jnp.float32)),
        grid=(ntiles,),
        in_specs=[
            pl.BlockSpec((TB, D), lambda i: (i, 0)),   # X tile (pipelined)
            _const_spec((D, HIDDEN)),                  # w1^T  (resident)
            _const_spec((1, HIDDEN)),                  # b1    (resident)
            _const_spec((HIDDEN, Dp)),                 # wa^T  (resident)
            _const_spec((1, Dp)),                      # ba    (resident)
            _const_spec((HIDDEN, Dp)),                 # wb^T  (resident)
            _const_spec((1, Dp)),                      # bb    (resident)
        ],
        out_specs=(pl.BlockSpec((TB, Dp), lambda i: (i, 0)),
                   pl.BlockSpec((TB, Dp), lambda i: (i, 0))),
        compiler_params=pltpu.CompilerParams(
            dimension_semantics=("parallel",),
            vmem_limit_bytes=vmem_limit),
        cost_estimate=cost,
    )(Xp, w1t, b1, wat, ba, wbt, bb)
    return alpha_p, beta_p


def beta_regressor_forward(prep, X, key, tb=512):
    """Forward pass matching BetaRegressor.forward.

    Returns (beta_sample, alpha, beta_param), each of shape (B, input_dim).
    """
    B, D = X.shape
    alpha_p, beta_p = _forward_heads(X, prep["w1t"], prep["b1"], prep["wat"],
                                     prep["ba"], prep["wbt"], prep["bb"], tb=tb)
    alpha = alpha_p[:B, :D]
    beta_param = beta_p[:B, :D]

    # Gamma(concentration=alpha, rate=beta).rsample() == standard_gamma(alpha)/beta.
    # TODO(synk): Gamma rejection sampling has no clean Pallas equivalent; done in JAX.
    beta_sample = jax.random.gamma(key, alpha) / beta_param
    return beta_sample, alpha, beta_param


def _reference_heads(params, X):
    """Pure-JAX f32 reference for alpha / beta_param."""
    h = jnp.maximum(X @ params["w1"].T + params["b1"], 0.0)
    a = h @ params["wa"].T + params["ba"]
    b = h @ params["wb"].T + params["bb"]
    sp = lambda z: jnp.maximum(z, 0.0) + jnp.log1p(jnp.exp(-jnp.abs(z)))
    return sp(a) + 1e-6, sp(b) + 1e-6


if __name__ == "__main__":
    batch = 8
    input_dim = 16

    root = jax.random.PRNGKey(0)
    k_params, k_x, k_sample = jax.random.split(root, 3)

    params = init_params(k_params, input_dim)
    prep = prepare_params(params)
    X = jax.random.normal(k_x, (batch, input_dim), jnp.float32)

    beta_sample, alpha, beta_param = beta_regressor_forward(prep, X, k_sample)
    jax.block_until_ready((beta_sample, alpha, beta_param))

    # sanity: shapes, positivity, and agreement with the f32 reference
    assert alpha.shape == (batch, input_dim)
    assert beta_param.shape == (batch, input_dim)
    assert beta_sample.shape == (batch, input_dim)
    assert bool(jnp.all(alpha > 0)) and bool(jnp.all(beta_param > 0))
    assert bool(jnp.all(jnp.isfinite(beta_sample)))

    a_ref, b_ref = _reference_heads(params, X)
    assert bool(jnp.allclose(alpha, a_ref, atol=1e-4, rtol=1e-4))
    assert bool(jnp.allclose(beta_param, b_ref, atol=1e-4, rtol=1e-4))

    print("KERNEL_OK")
</pallas_src>

<mosaic_0001>
module attributes {stable_mosaic.version = 11 : i64} {
  func.func @_beta_regressor_kernel(%arg0: i32, %arg1: memref<8x16xf32, #tpu.memory_space<vmem>>, %arg2: memref<16x128xf32, #tpu.memory_space<vmem>>, %arg3: memref<1x128xf32, #tpu.memory_space<vmem>>, %arg4: memref<128x128xf32, #tpu.memory_space<vmem>>, %arg5: memref<1x128xf32, #tpu.memory_space<vmem>>, %arg6: memref<128x128xf32, #tpu.memory_space<vmem>>, %arg7: memref<1x128xf32, #tpu.memory_space<vmem>>, %arg8: memref<8x128xf32, #tpu.memory_space<vmem>>, %arg9: memref<8x128xf32, #tpu.memory_space<vmem>>) attributes {dimension_semantics = [#tpu.dimension_semantics<parallel>], iteration_bounds = array<i64: 1>, scalar_prefetch = 0 : i64, scratch_operands = 0 : i64, tpu.core_type = #tpu.core_type<tc>, window_params = [{transform_indices = @transform_0, window_bounds = array<i64: 8, 16>}, {pipeline_mode = #tpu.pipeline_mode<synchronous>, transform_indices = @transform_1, window_bounds = array<i64: 16, 128>}, {pipeline_mode = #tpu.pipeline_mode<synchronous>, transform_indices = @transform_2, window_bounds = array<i64: 1, 128>}, {pipeline_mode = #tpu.pipeline_mode<synchronous>, transform_indices = @transform_3, window_bounds = array<i64: 128, 128>}, {pipeline_mode = #tpu.pipeline_mode<synchronous>, transform_indices = @transform_4, window_bounds = array<i64: 1, 128>}, {pipeline_mode = #tpu.pipeline_mode<synchronous>, transform_indices = @transform_5, window_bounds = array<i64: 128, 128>}, {pipeline_mode = #tpu.pipeline_mode<synchronous>, transform_indices = @transform_6, window_bounds = array<i64: 1, 128>}, {transform_indices = @transform_7, window_bounds = array<i64: 8, 128>}, {transform_indices = @transform_8, window_bounds = array<i64: 8, 128>}]} {
    %c0 = arith.constant 0 : index
    %c0_0 = arith.constant 0 : index
    %0 = vector.load %arg1[%c0, %c0_0] : memref<8x16xf32, #tpu.memory_space<vmem>>, vector<8x16xf32>
    %c0_1 = arith.constant 0 : index
    %c0_2 = arith.constant 0 : index
    %1 = vector.load %arg2[%c0_1, %c0_2] : memref<16x128xf32, #tpu.memory_space<vmem>>, vector<16x128xf32>
    %cst = arith.constant dense<0.000000e+00> : vector<8x128xf32>
    %2 = tpu.matmul %0, %1, %cst {dimension_numbers = #tpu.dot_dimension_numbers<[1], [0], [0], [1], [0, 0, 1, 1], [], []>} : vector<8x16xf32>, vector<16x128xf32>, vector<8x128xf32> -> vector<8x128xf32>
    %c0_3 = arith.constant 0 : index
    %c0_4 = arith.constant 0 : index
    %3 = vector.load %arg3[%c0_3, %c0_4] : memref<1x128xf32, #tpu.memory_space<vmem>>, vector<1x128xf32>
    %4 = vector.broadcast %3 : vector<1x128xf32> to vector<8x128xf32>
    %5 = arith.addf %2, %4 : vector<8x128xf32>
    %cst_5 = arith.constant 0.000000e+00 : f32
    %6 = vector.broadcast %cst_5 : f32 to vector<8x128xf32>
    %7 = arith.maximumf %5, %6 : vector<8x128xf32>
    %c0_6 = arith.constant 0 : index
    %c0_7 = arith.constant 0 : index
    %8 = vector.load %arg4[%c0_6, %c0_7] : memref<128x128xf32, #tpu.memory_space<vmem>>, vector<128x128xf32>
    %cst_8 = arith.constant dense<0.000000e+00> : vector<8x128xf32>
    %9 = tpu.matmul %7, %8, %cst_8 {dimension_numbers = #tpu.dot_dimension_numbers<[1], [0], [0], [1], [0, 0, 1, 1], [], []>} : vector<8x128xf32>, vector<128x128xf32>, vector<8x128xf32> -> vector<8x128xf32>
    %c0_9 = arith.constant 0 : index
    %c0_10 = arith.constant 0 : index
    %10 = vector.load %arg5[%c0_9, %c0_10] : memref<1x128xf32, #tpu.memory_space<vmem>>, vector<1x128xf32>
    %11 = vector.broadcast %10 : vector<1x128xf32> to vector<8x128xf32>
    %12 = arith.addf %9, %11 : vector<8x128xf32>
    %c0_11 = arith.constant 0 : index
    %c0_12 = arith.constant 0 : index
    %13 = vector.load %arg6[%c0_11, %c0_12] : memref<128x128xf32, #tpu.memory_space<vmem>>, vector<128x128xf32>
    %cst_13 = arith.constant dense<0.000000e+00> : vector<8x128xf32>
    %14 = tpu.matmul %7, %13, %cst_13 {dimension_numbers = #tpu.dot_dimension_numbers<[1], [0], [0], [1], [0, 0, 1, 1], [], []>} : vector<8x128xf32>, vector<128x128xf32>, vector<8x128xf32> -> vector<8x128xf32>
    %c0_14 = arith.constant 0 : index
    %c0_15 = arith.constant 0 : index
    %15 = vector.load %arg7[%c0_14, %c0_15] : memref<1x128xf32, #tpu.memory_space<vmem>>, vector<1x128xf32>
    %16 = vector.broadcast %15 : vector<1x128xf32> to vector<8x128xf32>
    %17 = arith.addf %14, %16 : vector<8x128xf32>
    %cst_16 = arith.constant 0.000000e+00 : f32
    %18 = vector.broadcast %cst_16 : f32 to vector<8x128xf32>
    %19 = arith.maximumf %12, %18 : vector<8x128xf32>
    %20 = math.absf %12 : vector<8x128xf32>
    %cst_17 = arith.constant 0.000000e+00 : f32
    %21 = vector.broadcast %cst_17 : f32 to vector<8x128xf32>
    %22 = arith.subf %21, %20 : vector<8x128xf32>
    %23 = math.exp %22 : vector<8x128xf32>
    %24 = math.log1p %23 : vector<8x128xf32>
    %25 = arith.addf %19, %24 : vector<8x128xf32>
    %cst_18 = arith.constant 9.99999997E-7 : f32
    %26 = vector.broadcast %cst_18 : f32 to vector<8x128xf32>
    %27 = arith.addf %25, %26 : vector<8x128xf32>
    %c0_19 = arith.constant 0 : index
    %c0_20 = arith.constant 0 : index
    %28 = vector.load %arg8[%c0_19, %c0_20] : memref<8x128xf32, #tpu.memory_space<vmem>>, vector<8x128xf32>
    tpu.vector_store %arg8[%c0_19, %c0_20], %27 {strides = array<i32>} : memref<8x128xf32, #tpu.memory_space<vmem>>, vector<8x128xf32>,
    %cst_21 = arith.constant 0.000000e+00 : f32
    %29 = vector.broadcast %cst_21 : f32 to vector<8x128xf32>
    %30 = arith.maximumf %17, %29 : vector<8x128xf32>
    %31 = math.absf %17 : vector<8x128xf32>
    %cst_22 = arith.constant 0.000000e+00 : f32
    %32 = vector.broadcast %cst_22 : f32 to vector<8x128xf32>
    %33 = arith.subf %32, %31 : vector<8x128xf32>
    %34 = math.exp %33 : vector<8x128xf32>
    %35 = math.log1p %34 : vector<8x128xf32>
    %36 = arith.addf %30, %35 : vector<8x128xf32>
    %cst_23 = arith.constant 9.99999997E-7 : f32
    %37 = vector.broadcast %cst_23 : f32 to vector<8x128xf32>
    %38 = arith.addf %36, %37 : vector<8x128xf32>
    %c0_24 = arith.constant 0 : index
    %c0_25 = arith.constant 0 : index
    %39 = vector.load %arg9[%c0_24, %c0_25] : memref<8x128xf32, #tpu.memory_space<vmem>>, vector<8x128xf32>
    tpu.vector_store %arg9[%c0_24, %c0_25], %38 {strides = array<i32>} : memref<8x128xf32, #tpu.memory_space<vmem>>, vector<8x128xf32>,
    return
  }
  func.func @transform_0(%arg0: i32) -> (i32, i32) {
    %c0_i32 = arith.constant 0 : i32
    %c0_i32_0 = arith.constant 0 : i32
    return %arg0, %c0_i32 : i32, i32
  }
  func.func @transform_1(%arg0: i32) -> (i32, i32) {
    %c0_i32 = arith.constant 0 : i32
    %c0_i32_0 = arith.constant 0 : i32
    %c0_i32_1 = arith.constant 0 : i32
    return %c0_i32, %c0_i32_0 : i32, i32
  }
  func.func @transform_2(%arg0: i32) -> (i32, i32) {
    %c0_i32 = arith.constant 0 : i32
    %c0_i32_0 = arith.constant 0 : i32
    %c0_i32_1 = arith.constant 0 : i32
    return %c0_i32, %c0_i32_0 : i32, i32
  }
  func.func @transform_3(%arg0: i32) -> (i32, i32) {
    %c0_i32 = arith.constant 0 : i32
    %c0_i32_0 = arith.constant 0 : i32
    %c0_i32_1 = arith.constant 0 : i32
    return %c0_i32, %c0_i32_0 : i32, i32
  }
  func.func @transform_4(%arg0: i32) -> (i32, i32) {
    %c0_i32 = arith.constant 0 : i32
    %c0_i32_0 = arith.constant 0 : i32
    %c0_i32_1 = arith.constant 0 : i32
    return %c0_i32, %c0_i32_0 : i32, i32
  }
  func.func @transform_5(%arg0: i32) -> (i32, i32) {
    %c0_i32 = arith.constant 0 : i32
    %c0_i32_0 = arith.constant 0 : i32
    %c0_i32_1 = arith.constant 0 : i32
    return %c0_i32, %c0_i32_0 : i32, i32
  }
  func.func @transform_6(%arg0: i32) -> (i32, i32) {
    %c0_i32 = arith.constant 0 : i32
    %c0_i32_0 = arith.constant 0 : i32
    %c0_i32_1 = arith.constant 0 : i32
    return %c0_i32, %c0_i32_0 : i32, i32
  }
  func.func @transform_7(%arg0: i32) -> (i32, i32) {
    %c0_i32 = arith.constant 0 : i32
    %c0_i32_0 = arith.constant 0 : i32
    return %arg0, %c0_i32 : i32, i32
  }
  func.func @transform_8(%arg0: i32) -> (i32, i32) {
    %c0_i32 = arith.constant 0 : i32
    %c0_i32_0 = arith.constant 0 : i32
    return %arg0, %c0_i32 : i32, i32
  }
}

</mosaic_0001>

<llo_original>
// kernel: _forward_heads.1
$region0: #{_forward_heads.1}
  #allocation0 [shape = 'u32[]', space=smem, size = 0x4, offset = 0x4, fixed_abs, tag = 'smem constant byte address 0x4 - core index']
  #allocation1 [shape = 'u32[144,128]{1,0:T(1,128)}', space=vmem, size = 0x12000, scoped, tag = 'internal scratch']
  %s0 = inlined_call_operand.hbm [shape: f32[8,16], index: 0, kind: input, shape index: {}]
  %s1 = inlined_call_operand.hbm [shape: f32[16,128], index: 1, kind: input, shape index: {}]
  %s2 = inlined_call_operand.vmem [shape: f32[1,128], index: 2, kind: input, shape index: {}]
  %s3 = inlined_call_operand.hbm [shape: f32[128,128], index: 3, kind: input, shape index: {}]
  %s4 = inlined_call_operand.vmem [shape: f32[1,128], index: 4, kind: input, shape index: {}]
  %s5 = inlined_call_operand.hbm [shape: f32[128,128], index: 5, kind: input, shape index: {}]
  %s6 = inlined_call_operand.vmem [shape: f32[1,128], index: 6, kind: input, shape index: {}]
  %s7 = inlined_call_operand.hbm [shape: f32[8,128], index: 7, kind: output, shape index: {0}]
  %s8 = inlined_call_operand.hbm [shape: f32[8,128], index: 8, kind: output, shape index: {1}]
  %9 = xla_tuple %s7, %s8
  %s10 = sld [smem:[#allocation0]]
  $region62: #{_forward_heads.1} parent=0
    _
  %s12 = ssub.s32 1, %s10
  %s13 = scalar_select 0, %s12, %s10
  $region1: #{_forward_heads.1} parent=0
    #allocation2 [shape = 'u8[4096]{0}', space=vmem, size = 0x1000, scoped, tag = 'input window, operand 0, single buffered']
    #allocation3 [shape = 's32[1]{0}', space=sflag, size = 0x4, scoped, tag = 'scoped memory for _forward_heads.1']
    #allocation4 [shape = 's32[1]{0}', space=sflag, size = 0x4, scoped, tag = 'scoped memory for _forward_heads.1']
    #allocation5 [shape = 'u8[8192]{0}', space=vmem, size = 0x2000, scoped, tag = 'input window, operand 1, single buffered']
    #allocation6 [shape = 's32[1]{0}', space=sflag, size = 0x4, scoped, tag = 'scoped memory for _forward_heads.1']
    #allocation7 [shape = 'u8[65536]{0}', space=vmem, size = 0x10000, scoped, tag = 'input window, operand 3, single buffered']
    #allocation8 [shape = 'u8[65536]{0}', space=vmem, size = 0x10000, scoped, tag = 'input window, operand 5, single buffered']
    #allocation9 [shape = 's32[1]{0}', space=sflag, size = 0x4, scoped, tag = 'scoped memory for _forward_heads.1']
    #allocation10 [shape = 'u8[4096]{0}', space=vmem, size = 0x1000, scoped, tag = 'output window, operand 0, single buffered']
    #allocation11 [shape = 'u8[4096]{0}', space=vmem, size = 0x1000, scoped, tag = 'output window, operand 1, single buffered']
    #allocation12 [shape = 's32[1]{0}', space=sflag, size = 0x4, scoped, tag = 'scoped memory for _forward_heads.1']
    %14 = vsyncpa [#allocation3], 0
    %15 = vsyncpa [#allocation6], 0
    %16 = vsyncpa [#allocation9], 0
    %17 = vsyncpa [#allocation4], 0
    %18 = vsyncpa [#allocation12], 0
    // Predicated region
    $region2: #{_forward_heads.1} parent=1 // pred_check
      _
    $region3: #{_forward_heads.1} parent=1 // pred_check_branch
      %20 = sbr.rel (0) target = $region5
    $region4: #{_forward_heads.1} parent=1 // pred_region
      %s22 = ssub.s32 128, 128
      %23 = vsyncadd [#allocation3], %s22
      %s25 = sshll.u32 [#allocation2], 4
      %s26 = int_to_ptr.vmem [resolvable:$true] %s25
      %28 = dma.hbm_to_vmem [thread:$0]  %s0, 128, %s26, [#allocation3]
    $region5: #{_forward_heads.1} parent=1 // pred_fallthru
      _
    // Predicated region
    $region6: #{_forward_heads.1} parent=1 // pred_check
      _
    $region7: #{_forward_heads.1} parent=1 // pred_check_branch
      %30 = sbr.rel (0) target = $region9
    $region8: #{_forward_heads.1} parent=1 // pred_region
      %s32 = ssub.s32 256, 256
      %33 = vsyncadd [#allocation6], %s32
      %s34 = sshll.u32 [#allocation5], 4
      %s35 = int_to_ptr.vmem [resolvable:$true] %s34
      %40 = dma.hbm_to_vmem [thread:$0]  %s1, 256, %s35, [#allocation6], 128, 128, 8
    $region9: #{_forward_heads.1} parent=1 // pred_fallthru
      _
    // Predicated region
    $region10: #{_forward_heads.1} parent=1 // pred_check
      _
    $region11: #{_forward_heads.1} parent=1 // pred_check_branch
      %42 = sbr.rel (0) target = $region13
    $region12: #{_forward_heads.1} parent=1 // pred_region
      _
    $region13: #{_forward_heads.1} parent=1 // pred_fallthru
      _
    // Predicated region
    $region14: #{_forward_heads.1} parent=1 // pred_check
      _
    $region15: #{_forward_heads.1} parent=1 // pred_check_branch
      %44 = sbr.rel (0) target = $region17
    $region16: #{_forward_heads.1} parent=1 // pred_region
      %s46 = ssub.s32 2048, 2048
      %47 = vsyncadd [#allocation6], %s46
      %s48 = sshll.u32 [#allocation7], 4
      %s49 = int_to_ptr.vmem [resolvable:$true] %s48
      %54 = dma.hbm_to_vmem [thread:$0]  %s3, 2048, %s49, [#allocation6], 128, 128, 8
    $region17: #{_forward_heads.1} parent=1 // pred_fallthru
      _
    // Predicated region
    $region18: #{_forward_heads.1} parent=1 // pred_check
      _
    $region19: #{_forward_heads.1} parent=1 // pred_check_branch
      %56 = sbr.rel (0) target = $region21
    $region20: #{_forward_heads.1} parent=1 // pred_region
      _
    $region21: #{_forward_heads.1} parent=1 // pred_fallthru
      _
    // Predicated region
    $region22: #{_forward_heads.1} parent=1 // pred_check
      _
    $region23: #{_forward_heads.1} parent=1 // pred_check_branch
      %58 = sbr.rel (0) target = $region25
    $region24: #{_forward_heads.1} parent=1 // pred_region
      %s60 = ssub.s32 2048, 2048
      %61 = vsyncadd [#allocation9], %s60
      %s62 = sshll.u32 [#allocation8], 4
      %s63 = int_to_ptr.vmem [resolvable:$true] %s62
      %68 = dma.hbm_to_vmem [thread:$0]  %s5, 2048, %s63, [#allocation9], 128, 128, 8
    $region25: #{_forward_heads.1} parent=1 // pred_fallthru
      _
    // Predicated region
    $region26: #{_forward_heads.1} parent=1 // pred_check
      _
    $region27: #{_forward_heads.1} parent=1 // pred_check_branch
      %70 = sbr.rel (0) target = $region29
    $region28: #{_forward_heads.1} parent=1 // pred_region
      _
    $region29: #{_forward_heads.1} parent=1 // pred_fallthru
      _
    // Predicated region
    $region30: #{_forward_heads.1} parent=1 // pred_check
      _
    $region31: #{_forward_heads.1} parent=1 // pred_check_branch
      %72 = sbr.rel (0) target = $region33
    $region32: #{_forward_heads.1} parent=1 // pred_region
      %73 = dma.done [#allocation3], 128
    $region33: #{_forward_heads.1} parent=1 // pred_fallthru
      _
    // Predicated region
    $region34: #{_forward_heads.1} parent=1 // pred_check
      _
    $region35: #{_forward_heads.1} parent=1 // pred_check_branch
      %75 = sbr.rel (0) target = $region37
    $region36: #{_forward_heads.1} parent=1 // pred_region
      %76 = dma.done [#allocation6], 256
    $region37: #{_forward_heads.1} parent=1 // pred_fallthru
      _
    // Predicated region
    $region38: #{_forward_heads.1} parent=1 // pred_check
      _
    $region39: #{_forward_heads.1} parent=1 // pred_check_branch
      %78 = sbr.rel (0) target = $region41
    $region40: #{_forward_heads.1} parent=1 // pred_region
      %79 = dma.done [#allocation6], 2048
    $region41: #{_forward_heads.1} parent=1 // pred_fallthru
      _
    // Predicated region
    $region42: #{_forward_heads.1} parent=1 // pred_check
      _
    $region43: #{_forward_heads.1} parent=1 // pred_check_branch
      %81 = sbr.rel (0) target = $region45
    $region44: #{_forward_heads.1} parent=1 // pred_region
      %82 = dma.done [#allocation9], 2048
    $region45: #{_forward_heads.1} parent=1 // pred_fallthru
      _
    %v83 = vld [vmem:[#allocation2] sm:$0xff]
    %v84 = vld [vmem:[#allocation5] sm:$0xff]
    %v85 = vld [vmem:[#allocation5 + $0x8] sm:$0xff]
    %v86 = vld [vmem:[%s2] sm:$0x1]
    %v88 = vlaneseq
    %v89 = vshrl.u32 %v88, 7
    %v90 = vsub.s32 0, %v89
    %v91 = vrot.slane %v86, %v90
    %vm93 = vcmask 130048
    %v95 = vsel %vm93, %v83, 0
    %97 = vmatprep.subr.mxu0 0.0
    %98 = vmatpush1.msra.mxu0 %v84
    %99 = vmatprep.subr.mxu0 0.0
    %100 = vmatpush1.msra.mxu0 %v85
    %101 = vmatprep.subr.mxu0 0.0
    %102 = vmatpush1.msra.mxu0 0.0
    %103 = vmatprep.subr.mxu0 0.0
    %104 = vmatpush1.msra.mxu0 0.0
    %105 = vmatprep.subr.mxu0 0.0
    %106 = vmatpush1.msra.mxu0 0.0
    %107 = vmatprep.subr.mxu0 0.0
    %108 = vmatpush1.msra.mxu0 0.0
    %109 = vmatprep.subr.mxu0 0.0
    %110 = vmatpush1.msra.mxu0 0.0
    %111 = vmatprep.subr.mxu0 0.0
    %112 = vmatpush1.msra.mxu0 0.0
    %113 = vmatprep.subr.mxu0 0.0
    %114 = vmatpush1.msra.mxu0 0.0
    %115 = vmatprep.subr.mxu0 0.0
    %116 = vmatpush1.msra.mxu0 0.0
    %117 = vmatprep.subr.mxu0 0.0
    %118 = vmatpush1.msra.mxu0 0.0
    %119 = vmatprep.subr.mxu0 0.0
    %120 = vmatpush1.msra.mxu0 0.0
    %121 = vmatprep.subr.mxu0 0.0
    %122 = vmatpush1.msra.mxu0 0.0
    %123 = vmatprep.subr.mxu0 0.0
    %124 = vmatpush1.msra.mxu0 0.0
    %125 = vmatprep.subr.mxu0 0.0
    %126 = vmatpush1.msra.mxu0 0.0
    %127 = vmatprep.subr.mxu0 0.0
    %128 = vmatpush1.msra.mxu0 0.0
    %129 = vmatprep.subr.mxu0 0.0
    %130 = vmatpush1.msra.mxu0 0.0
    %131 = vmatprep.subr.mxu0 0.0
    %132 = vmatpush1.msra.mxu0 0.0
    %133 = vmatprep.subr.mxu0 0.0
    %134 = vmatpush1.msra.mxu0 0.0
    %135 = vmatprep.subr.mxu0 0.0
    %136 = vmatpush1.msra.mxu0 0.0
    %137 = vmatprep.subr.mxu0 0.0
    %138 = vmatpush1.msra.mxu0 0.0
    %139 = vmatprep.subr.mxu0 0.0
    %140 = vmatpush1.msra.mxu0 0.0
    %141 = vmatprep.subr.mxu0 0.0
    %142 = vmatpush1.msra.mxu0 0.0
    %143 = vmatprep.subr.mxu0 0.0
    %144 = vmatpush1.msra.mxu0 0.0
    %145 = vmatprep.subr.mxu0 0.0
    %146 = vmatpush1.msra.mxu0 0.0
    %147 = vmatprep.subr.mxu0 0.0
    %148 = vmatpush1.msra.mxu0 0.0
    %149 = vmatprep.subr.mxu0 0.0
    %150 = vmatpush1.msra.mxu0 0.0
    %151 = vmatprep.subr.mxu0 0.0
    %152 = vmatpush1.msra.mxu0 0.0
    %153 = vmatprep.subr.mxu0 0.0
    %154 = vmatpush1.msra.mxu0 0.0
    %155 = vmatprep.subr.mxu0 0.0
    %156 = vmatpush1.msra.mxu0 0.0
    %157 = vmatprep.subr.mxu0 0.0
    %158 = vmatpush1.msra.mxu0 0.0
    %159 = vmatprep.subr.mxu0 0.0
    %160 = vmatpush1.msra.mxu0 0.0
    %161 = vmatprep.mubr.f32.mxu0 0.0
    %162 = vmatmul.mubr.f32.gmra.mrb[0].mxu0 %v95
    %v163 = vpop.f32.mrb[0].mxu0
    %v164 = vadd.f32 %v91, %v163
    %v165 = vpop.f32.mrb[0].mxu0
    %166 = vdwg.mxu0
    %v167 = vmax.f32 %v164, 0.0
    %v168 = vld [vmem:[#allocation7] sm:$0xff]
    %v169 = vld [vmem:[#allocation7 + $0x8] sm:$0xff]
    %v170 = vld [vmem:[#allocation7 + $0x10] sm:$0xff]
    %v171 = vld [vmem:[#allocation7 + $0x18] sm:$0xff]
    %v172 = vld [vmem:[#allocation7 + $0x20] sm:$0xff]
    %v173 = vld [vmem:[#allocation7 + $0x28] sm:$0xff]
    %v174 = vld [vmem:[#allocation7 + $0x30] sm:$0xff]
    %v175 = vld [vmem:[#allocation7 + $0x38] sm:$0xff]
    %v176 = vld [vmem:[#allocation7 + $0x40] sm:$0xff]
    %v177 = vld [vmem:[#allocation7 + $0x48] sm:$0xff]
    %v178 = vld [vmem:[#allocation7 + $0x50] sm:$0xff]
    %v179 = vld [vmem:[#allocation7 + $0x58] sm:$0xff]
    %v180 = vld [vmem:[#allocation7 + $0x60] sm:$0xff]
    %v181 = vld [vmem:[#allocation7 + $0x68] sm:$0xff]
    %v182 = vld [vmem:[#allocation7 + $0x70] sm:$0xff]
    %v183 = vld [vmem:[#allocation7 + $0x78] sm:$0xff]
    %v184 = vld [vmem:[%s4] sm:$0x1]
    %v186 = vlaneseq
    %v187 = vshrl.u32 %v186, 7
    %v188 = vsub.s32 0, %v187
    %v189 = vrot.slane %v184, %v188
    %191 = vmatprep.subr.mxu0 0.0
    %192 = vmatpush1.msra.mxu0 %v168
    %193 = vmatprep.subr.mxu0 0.0
    %194 = vmatpush1.msra.mxu0 %v169
    %195 = vmatprep.subr.mxu0 0.0
    %196 = vmatpush1.msra.mxu0 %v170
    %197 = vmatprep.subr.mxu0 0.0
    %198 = vmatpush1.msra.mxu0 %v171
    %199 = vmatprep.subr.mxu0 0.0
    %200 = vmatpush1.msra.mxu0 %v172
    %201 = vmatprep.subr.mxu0 0.0
    %202 = vmatpush1.msra.mxu0 %v173
    %203 = vmatprep.subr.mxu0 0.0
    %204 = vmatpush1.msra.mxu0 %v174
    %205 = vmatprep.subr.mxu0 0.0
    %206 = vmatpush1.msra.mxu0 %v175
    %207 = vmatprep.subr.mxu0 0.0
    %208 = vmatpush1.msra.mxu0 %v176
    %209 = vmatprep.subr.mxu0 0.0
    %210 = vmatpush1.msra.mxu0 %v177
    %211 = vmatprep.subr.mxu0 0.0
    %212 = vmatpush1.msra.mxu0 %v178
    %213 = vmatprep.subr.mxu0 0.0
    %214 = vmatpush1.msra.mxu0 %v179
    %215 = vmatprep.subr.mxu0 0.0
    %216 = vmatpush1.msra.mxu0 %v180
    %217 = vmatprep.subr.mxu0 0.0
    %218 = vmatpush1.msra.mxu0 %v181
    %219 = vmatprep.subr.mxu0 0.0
    %220 = vmatpush1.msra.mxu0 %v182
    %221 = vmatprep.subr.mxu0 0.0
    %222 = vmatpush1.msra.mxu0 %v183
    %223 = vmatprep.subr.mxu0 0.0
    %224 = vmatpush1.msra.mxu0 0.0
    %225 = vmatprep.subr.mxu0 0.0
    %226 = vmatpush1.msra.mxu0 0.0
    %227 = vmatprep.subr.mxu0 0.0
    %228 = vmatpush1.msra.mxu0 0.0
    %229 = vmatprep.subr.mxu0 0.0
    %230 = vmatpush1.msra.mxu0 0.0
    %231 = vmatprep.subr.mxu0 0.0
    %232 = vmatpush1.msra.mxu0 0.0
    %233 = vmatprep.subr.mxu0 0.0
    %234 = vmatpush1.msra.mxu0 0.0
    %235 = vmatprep.subr.mxu0 0.0
    %236 = vmatpush1.msra.mxu0 0.0
    %237 = vmatprep.subr.mxu0 0.0
    %238 = vmatpush1.msra.mxu0 0.0
    %239 = vmatprep.subr.mxu0 0.0
    %240 = vmatpush1.msra.mxu0 0.0
    %241 = vmatprep.subr.mxu0 0.0
    %242 = vmatpush1.msra.mxu0 0.0
    %243 = vmatprep.subr.mxu0 0.0
    %244 = vmatpush1.msra.mxu0 0.0
    %245 = vmatprep.subr.mxu0 0.0
    %246 = vmatpush1.msra.mxu0 0.0
    %247 = vmatprep.subr.mxu0 0.0
    %248 = vmatpush1.msra.mxu0 0.0
    %249 = vmatprep.subr.mxu0 0.0
    %250 = vmatpush1.msra.mxu0 0.0
    %251 = vmatprep.subr.mxu0 0.0
    %252 = vmatpush1.msra.mxu0 0.0
    %253 = vmatprep.subr.mxu0 0.0
    %254 = vmatpush1.msra.mxu0 0.0
    %255 = vmatprep.mubr.f32.mxu0 0.0
    %256 = vmatmul.mubr.f32.gmra.mrb[0].mxu0 %v167
    %v257 = vpop.f32.mrb[0].mxu0
    %v258 = vadd.f32 %v189, %v257
    %v259 = vpop.f32.mrb[0].mxu0
    %260 = vdwg.mxu0
    %v261 = vld [vmem:[#allocation8] sm:$0xff]
    %v262 = vld [vmem:[#allocation8 + $0x8] sm:$0xff]
    %v263 = vld [vmem:[#allocation8 + $0x10] sm:$0xff]
    %v264 = vld [vmem:[#allocation8 + $0x18] sm:$0xff]
    %v265 = vld [vmem:[#allocation8 + $0x20] sm:$0xff]
    %v266 = vld [vmem:[#allocation8 + $0x28] sm:$0xff]
    %v267 = vld [vmem:[#allocation8 + $0x30] sm:$0xff]
    %v268 = vld [vmem:[#allocation8 + $0x38] sm:$0xff]
    %v269 = vld [vmem:[#allocation8 + $0x40] sm:$0xff]
    %v270 = vld [vmem:[#allocation8 + $0x48] sm:$0xff]
    %v271 = vld [vmem:[#allocation8 + $0x50] sm:$0xff]
    %v272 = vld [vmem:[#allocation8 + $0x58] sm:$0xff]
    %v273 = vld [vmem:[#allocation8 + $0x60] sm:$0xff]
    %v274 = vld [vmem:[#allocation8 + $0x68] sm:$0xff]
    %v275 = vld [vmem:[#allocation8 + $0x70] sm:$0xff]
    %v276 = vld [vmem:[#allocation8 + $0x78] sm:$0xff]
    %v277 = vld [vmem:[%s6] sm:$0x1]
    %v279 = vlaneseq
    %v280 = vshrl.u32 %v279, 7
    %v281 = vsub.s32 0, %v280
    %v282 = vrot.slane %v277, %v281
    %284 = vmatprep.subr.mxu0 0.0
    %285 = vmatpush1.msra.mxu0 %v261
    %286 = vmatprep.subr.mxu0 0.0
    %287 = vmatpush1.msra.mxu0 %v262
    %288 = vmatprep.subr.mxu0 0.0
    %289 = vmatpush1.msra.mxu0 %v263
    %290 = vmatprep.subr.mxu0 0.0
    %291 = vmatpush1.msra.mxu0 %v264
    %292 = vmatprep.subr.mxu0 0.0
    %293 = vmatpush1.msra.mxu0 %v265
    %294 = vmatprep.subr.mxu0 0.0
    %295 = vmatpush1.msra.mxu0 %v266
    %296 = vmatprep.subr.mxu0 0.0
    %297 = vmatpush1.msra.mxu0 %v267
    %298 = vmatprep.subr.mxu0 0.0
    %299 = vmatpush1.msra.mxu0 %v268
    %300 = vmatprep.subr.mxu0 0.0
    %301 = vmatpush1.msra.mxu0 %v269
    %302 = vmatprep.subr.mxu0 0.0
    %303 = vmatpush1.msra.mxu0 %v270
    %304 = vmatprep.subr.mxu0 0.0
    %305 = vmatpush1.msra.mxu0 %v271
    %306 = vmatprep.subr.mxu0 0.0
    %307 = vmatpush1.msra.mxu0 %v272
    %308 = vmatprep.subr.mxu0 0.0
    %309 = vmatpush1.msra.mxu0 %v273
    %310 = vmatprep.subr.mxu0 0.0
    %311 = vmatpush1.msra.mxu0 %v274
    %312 = vmatprep.subr.mxu0 0.0
    %313 = vmatpush1.msra.mxu0 %v275
    %314 = vmatprep.subr.mxu0 0.0
    %315 = vmatpush1.msra.mxu0 %v276
    %316 = vmatprep.subr.mxu0 0.0
    %317 = vmatpush1.msra.mxu0 0.0
    %318 = vmatprep.subr.mxu0 0.0
    %319 = vmatpush1.msra.mxu0 0.0
    %320 = vmatprep.subr.mxu0 0.0
    %321 = vmatpush1.msra.mxu0 0.0
    %322 = vmatprep.subr.mxu0 0.0
    %323 = vmatpush1.msra.mxu0 0.0
    %324 = vmatprep.subr.mxu0 0.0
    %325 = vmatpush1.msra.mxu0 0.0
    %326 = vmatprep.subr.mxu0 0.0
    %327 = vmatpush1.msra.mxu0 0.0
    %328 = vmatprep.subr.mxu0 0.0
    %329 = vmatpush1.msra.mxu0 0.0
    %330 = vmatprep.subr.mxu0 0.0
    %331 = vmatpush1.msra.mxu0 0.0
    %332 = vmatprep.subr.mxu0 0.0
    %333 = vmatpush1.msra.mxu0 0.0
    %334 = vmatprep.subr.mxu0 0.0
    %335 = vmatpush1.msra.mxu0 0.0
    %336 = vmatprep.subr.mxu0 0.0
    %337 = vmatpush1.msra.mxu0 0.0
    %338 = vmatprep.subr.mxu0 0.0
    %339 = vmatpush1.msra.mxu0 0.0
    %340 = vmatprep.subr.mxu0 0.0
    %341 = vmatpush1.msra.mxu0 0.0
    %342 = vmatprep.subr.mxu0 0.0
    %343 = vmatpush1.msra.mxu0 0.0
    %344 = vmatprep.subr.mxu0 0.0
    %345 = vmatpush1.msra.mxu0 0.0
    %346 = vmatprep.subr.mxu0 0.0
    %347 = vmatpush1.msra.mxu0 0.0
    %348 = vmatprep.mubr.f32.mxu0 0.0
    %349 = vmatmul.mubr.f32.gmra.mrb[0].mxu0 %v167
    %v350 = vpop.f32.mrb[0].mxu0
    %v351 = vadd.f32 %v282, %v350
    %v352 = vpop.f32.mrb[0].mxu0
    %353 = vdwg.mxu0
    %v354 = vmax.f32 %v258, 0.0
    %v355 = vand.u32 2147483647, %v258
    %v356 = vsub.f32 0.0, %v355
    %v357 = vmul.f32 %v356, 1.442695
    %v358 = vpow.pop %v357
    %v359 = vadd.f32 %v358, 1.0
    %v360 = vlog2.pop %v359
    %v361 = vmul.f32 %v360, 0.6931472
    %v362 = vmul.f32 -0.5, %v358
    %v363 = vadd.f32 %v362, 1.0
    %v364 = vmul.f32 %v363, %v358
    %v365 = vand.u32 2147483647, %v358
    %vm366 = vcmp.lt.f32.partialorder %v365, 0.0004427343
    %v367 = vsel %vm366, %v364, %v361
    %v368 = vadd.f32 %v354, %v367
    %v369 = vadd.f32 %v368, 1e-06
    %370 = vst [vmem:[#allocation10] sm:$0xff] %v369
    %v371 = vmax.f32 %v351, 0.0
    %v372 = vand.u32 2147483647, %v351
    %v373 = vsub.f32 0.0, %v372
    %v374 = vmul.f32 %v373, 1.442695
    %v375 = vpow.pop %v374
    %v376 = vadd.f32 %v375, 1.0
    %v377 = vlog2.pop %v376
    %v378 = vmul.f32 %v377, 0.6931472
    %v379 = vmul.f32 -0.5, %v375
    %v380 = vadd.f32 %v379, 1.0
    %v381 = vmul.f32 %v380, %v375
    %v382 = vand.u32 2147483647, %v375
    %vm383 = vcmp.lt.f32.partialorder %v382, 0.0004427343
    %v384 = vsel %vm383, %v381, %v378
    %v385 = vadd.f32 %v371, %v384
    %v386 = vadd.f32 %v385, 1e-06
    %387 = vst [vmem:[#allocation11] sm:$0xff] %v386
    // Predicated region
    $region46: #{_forward_heads.1} parent=1 // pred_check
      _
    $region47: #{_forward_heads.1} parent=1 // pred_check_branch
      %389 = sbr.rel (0) target = $region49
    $region48: #{_forward_heads.1} parent=1 // pred_region
      %s391 = ssub.s32 128, 128
      %392 = vsyncadd [#allocation4], %s391
      %s394 = sshll.u32 [#allocation10], 4
      %s395 = int_to_ptr.vmem [resolvable:$true] %s394
      %397 = dma.vmem_to_hbm [thread:$0]  %s395, 128, %s7, [#allocation4]
    $region49: #{_forward_heads.1} parent=1 // pred_fallthru
      _
    // Predicated region
    $region50: #{_forward_heads.1} parent=1 // pred_check
      _
    $region51: #{_forward_heads.1} parent=1 // pred_check_branch
      %399 = sbr.rel (0) target = $region53
    $region52: #{_forward_heads.1} parent=1 // pred_region
      %s401 = ssub.s32 128, 128
      %402 = vsyncadd [#allocation12], %s401
      %s404 = sshll.u32 [#allocation11], 4
      %s405 = int_to_ptr.vmem [resolvable:$true] %s404
      %407 = dma.vmem_to_hbm [thread:$0]  %s405, 128, %s8, [#allocation12]
    $region53: #{_forward_heads.1} parent=1 // pred_fallthru
      _
    // Predicated region
    $region54: #{_forward_heads.1} parent=1 // pred_check
      _
    $region55: #{_forward_heads.1} parent=1 // pred_check_branch
      %409 = sbr.rel (0) target = $region57
    $region56: #{_forward_heads.1} parent=1 // pred_region
      %410 = dma.done [#allocation4], 128
    $region57: #{_forward_heads.1} parent=1 // pred_fallthru
      _
    // Predicated region
    $region58: #{_forward_heads.1} parent=1 // pred_check
      _
    $region59: #{_forward_heads.1} parent=1 // pred_check_branch
      %412 = sbr.rel (0) target = $region61
    $region60: #{_forward_heads.1} parent=1 // pred_region
      %413 = dma.done [#allocation12], 128
    $region61: #{_forward_heads.1} parent=1 // pred_fallthru
      _
    %414 = vsyncpa [#allocation3], 1
    %415 = vsyncpa [#allocation6], 1
    %416 = vsyncpa [#allocation9], 1
    %417 = vsyncpa [#allocation4], 1
    %418 = vsyncpa [#allocation12], 1

</llo_original>
